<compile_context>
chip_gen: v7x
topology: tpu7x:2x2x1
jax: 0.10.0
libtpu: 0.0.40
codegen_flags: <defaults>
</compile_context>

<pallas_src>
import functools

import jax
import jax.numpy as jnp
from jax.experimental import pallas as pl
from jax.experimental.pallas import tpu as pltpu

LANE = 128              # pad feature/hidden/class dims to lane multiples (dense vst)
DEFAULT_ROW_TILE = 256  # adj row tile: multiple of 256 (v6e/v7x MXU), fine on v5e
MAX_K_TILE = 2048       # target adj reduction-tile width

# ---- per-generation VMEM budget -------------------------------------------------
_VMEM_FALLBACK = 64 * 1024 * 1024
try:  # v5e/v6e: 128 MiB physical; v7x: 64 MiB per TensorCore
    _VMEM_PHYS = int(getattr(pltpu.get_tpu_info(), "vmem_capacity_bytes",
                             _VMEM_FALLBACK))
except Exception:  # pragma: no cover - conservative fallback off-TPU / old runtimes
    _VMEM_PHYS = _VMEM_FALLBACK
VMEM_LIMIT = max(32 * 1024 * 1024, min(96 * 1024 * 1024, (_VMEM_PHYS * 3) // 4))
TILE_BUDGET = max(8 * 1024 * 1024, VMEM_LIMIT - 8 * 1024 * 1024)


def _round_up(v, m):
    return ((v + m - 1) // m) * m


def _pad2d(a, rows, cols):
    r, c = a.shape
    return jnp.pad(a, ((0, rows - r), (0, cols - c)))


def _choose_config(n, h_in_max, h_out_max, budget):
    """Pick (tile_m, tile_k, n_pad, p_resident) against the VMEM budget."""
    n128 = _round_up(n, 128)
    tile_m = min(DEFAULT_ROW_TILE, n128)
    n_pad = _round_up(n, tile_m)
    if n_pad <= MAX_K_TILE:
        cands = [n_pad]                       # whole reduction in one k-step
    else:
        cands = [tk for tk in (2048, 1024, 512, 256) if n_pad % tk == 0] or [tile_m]

    def vmem_bytes(tk, p_res):
        adj_b = 2 * tile_m * tk * 2                        # bf16 adj, double-buffered
        p_b = 2 * (n_pad if p_res else tk) * h_in_max * 2  # bf16 p (x2 conservative)
        w_b = 2 * h_in_max * h_out_max * 2                 # bf16 resident weights
        acc_b = tile_m * h_in_max * 4                      # f32 accumulator scratch
        out_b = 2 * tile_m * (h_out_max + h_in_max) * 4    # outputs (head has two)
        return adj_b + p_b + w_b + acc_b + out_b + (1 << 20)

    for tk in cands:                          # largest k-tile first, prefer resident p
        if vmem_bytes(tk, True) <= budget:
            return tile_m, tk, n_pad, True
        if vmem_bytes(tk, False) <= budget:
            return tile_m, tk, n_pad, False
    return tile_m, cands[-1], n_pad, False


# ---------------- Kernel 1: row-tiled projection  p1 = x @ W1 + b1 ----------------
def _linear_kernel(x_ref, w_ref, b_ref, p_ref):
    p = jnp.dot(x_ref[...], w_ref[...], preferred_element_type=jnp.float32)
    p_ref[...] = (p + b_ref[...]).astype(p_ref.dtype)


def _p_block(p_ref, k, tile_k, p_resident):
    if p_resident:
        start = pl.multiple_of(k * tile_k, tile_k)
        return p_ref[pl.ds(start, tile_k), :]
    return p_ref[...]


# ------- Kernel 2: tiled h = relu(adj @ p1), fused  p2 = h @ W2 + b2 (bf16) -------
def _prop_project_kernel(adj_ref, p_ref, w_ref, b_ref, out_ref, acc_ref,
                         *, tile_k, p_resident):
    k = pl.program_id(1)

    @pl.when(k == 0)
    def _():
        acc_ref[...] = jnp.zeros_like(acc_ref)

    # bf16 x bf16 MXU matmul, f32 accumulation.
    acc_ref[...] += jnp.dot(adj_ref[...], _p_block(p_ref, k, tile_k, p_resident),
                            preferred_element_type=jnp.float32)

    @pl.when(k == pl.num_programs(1) - 1)
    def _():
        h = jnp.maximum(acc_ref[...], 0.0)               # Z_0 (dropout = identity, eval)
        p2 = jnp.dot(h.astype(jnp.bfloat16), w_ref[...],
                     preferred_element_type=jnp.float32) + b_ref[...]
        out_ref[...] = p2.astype(out_ref.dtype)


# --- Kernel 3: tiled z1 = relu(adj @ p2), fused fc3 + masked log_softmax (f32) ----
def _prop_head_kernel(adj_ref, p_ref, w_ref, b_ref, logp_ref, z1_ref, acc_ref,
                      *, n_class, tile_k, p_resident):
    k = pl.program_id(1)

    @pl.when(k == 0)
    def _():
        acc_ref[...] = jnp.zeros_like(acc_ref)

    acc_ref[...] += jnp.dot(adj_ref[...], _p_block(p_ref, k, tile_k, p_resident),
                            preferred_element_type=jnp.float32)

    @pl.when(k == pl.num_programs(1) - 1)
    def _():
        z1 = jnp.maximum(acc_ref[...], 0.0)              # Z_1 (f32)
        logits = jnp.dot(z1.astype(jnp.bfloat16), w_ref[...],
                         preferred_element_type=jnp.float32) + b_ref[...]
        # Mask the lane-padding class columns out of the softmax (f32 path).
        col = jax.lax.broadcasted_iota(jnp.int32, logits.shape, 1)
        logits = jnp.where(col < n_class, logits, jnp.full_like(logits, -1e30))
        m = jnp.max(logits, axis=1, keepdims=True)
        s = logits - m
        lse = jnp.log(jnp.sum(jnp.exp(s), axis=1, keepdims=True))
        logp_ref[...] = (s - lse).astype(logp_ref.dtype)
        z1_ref[...] = z1.astype(z1_ref.dtype)


def gnn_forward(x, adj, w1, b1, w2, b2, w3, b3):
    n, f = x.shape
    h1, h2, c = w1.shape[1], w2.shape[1], w3.shape[1]

    f_pad = _round_up(f, LANE)
    h1_pad = _round_up(h1, LANE)
    h2_pad = _round_up(h2, LANE)
    c_pad = _round_up(c, LANE)
    h_in_max = max(h1_pad, h2_pad)
    h_out_max = max(h2_pad, c_pad)

    tile_m, tile_k, n_pad, p_resident = _choose_config(n, h_in_max, h_out_max,
                                                       TILE_BUDGET)
    n_row, n_red = n_pad // tile_m, n_pad // tile_k

    # Cast to bf16 BEFORE padding (no padded f32 N^2 intermediate in HBM).
    adj_p = _pad2d(adj.astype(jnp.bfloat16), n_pad, n_pad)
    x_p = _pad2d(x.astype(jnp.bfloat16), n_pad, f_pad)
    w1_p = _pad2d(w1.astype(jnp.bfloat16), f_pad, h1_pad)
    w2_p = _pad2d(w2.astype(jnp.bfloat16), h1_pad, h2_pad)
    w3_p = _pad2d(w3.astype(jnp.bfloat16), h2_pad, c_pad)
    b1_p = _pad2d(b1.reshape(1, -1).astype(jnp.float32), 1, h1_pad)
    b2_p = _pad2d(b2.reshape(1, -1).astype(jnp.float32), 1, h2_pad)
    b3_p = _pad2d(b3.reshape(1, -1).astype(jnp.float32), 1, c_pad)

    cparams_1d = pltpu.CompilerParams(
        dimension_semantics=("parallel",), vmem_limit_bytes=VMEM_LIMIT)
    cparams_2d = pltpu.CompilerParams(
        dimension_semantics=("parallel", "arbitrary"), vmem_limit_bytes=VMEM_LIMIT)

    # Resident (DMA'd once) specs for the 2-D-grid kernels.
    resident2 = lambda shape: pl.BlockSpec(shape, lambda i, k: (0, 0))

    def p_spec(h_pad):
        if p_resident:   # whole activation resident in VMEM; k-chunk sliced in-kernel
            return pl.BlockSpec((n_pad, h_pad), lambda i, k: (0, 0))
        return pl.BlockSpec((tile_k, h_pad), lambda i, k: (k, 0))

    # --- p1 = x @ W1 + b1  (bf16 output, row-tiled) --------------------------------
    p1 = pl.pallas_call(
        _linear_kernel,
        out_shape=jax.ShapeDtypeStruct((n_pad, h1_pad), jnp.bfloat16),
        grid_spec=pltpu.PrefetchScalarGridSpec(
            num_scalar_prefetch=0,
            grid=(n_row,),
            in_specs=[
                pl.BlockSpec((tile_m, f_pad), lambda i: (i, 0)),
                pl.BlockSpec((f_pad, h1_pad), lambda i: (0, 0)),
                pl.BlockSpec((1, h1_pad), lambda i: (0, 0)),
            ],
            out_specs=pl.BlockSpec((tile_m, h1_pad), lambda i: (i, 0)),
        ),
        compiler_params=cparams_1d,
    )(x_p, w1_p, b1_p)

    # --- p2 = relu(adj @ p1) @ W2 + b2  (rectangular adj tiles, tiled reduction) ---
    p2 = pl.pallas_call(
        functools.partial(_prop_project_kernel, tile_k=tile_k, p_resident=p_resident),
        out_shape=jax.ShapeDtypeStruct((n_pad, h2_pad), jnp.bfloat16),
        grid_spec=pltpu.PrefetchScalarGridSpec(
            num_scalar_prefetch=0,
            grid=(n_row, n_red),
            in_specs=[
                pl.BlockSpec((tile_m, tile_k), lambda i, k: (i, k)),  # adj tile (bf16)
                p_spec(h1_pad),                                       # p1 (resident/stream)
                resident2((h1_pad, h2_pad)),                          # W2 (bf16, resident)
                resident2((1, h2_pad)),                               # b2 (f32, resident)
            ],
            out_specs=pl.BlockSpec((tile_m, h2_pad), lambda i, k: (i, 0)),
            scratch_shapes=[pltpu.VMEM((tile_m, h1_pad), jnp.float32)],
        ),
        compiler_params=cparams_2d,
    )(adj_p, p1, w2_p, b2_p)

    # --- z1 = relu(adj @ p2);  logp = log_softmax(z1 @ W3 + b3) --------------------
    logp_p, z1_p = pl.pallas_call(
        functools.partial(_prop_head_kernel, n_class=c, tile_k=tile_k,
                          p_resident=p_resident),
        out_shape=(
            jax.ShapeDtypeStruct((n_pad, c_pad), jnp.float32),
            jax.ShapeDtypeStruct((n_pad, h2_pad), jnp.float32),
        ),
        grid_spec=pltpu.PrefetchScalarGridSpec(
            num_scalar_prefetch=0,
            grid=(n_row, n_red),
            in_specs=[
                pl.BlockSpec((tile_m, tile_k), lambda i, k: (i, k)),  # adj tile (bf16)
                p_spec(h2_pad),                                       # p2 (resident/stream)
                resident2((h2_pad, c_pad)),                           # W3 (bf16, resident)
                resident2((1, c_pad)),                                # b3 (f32, resident)
            ],
            out_specs=(
                pl.BlockSpec((tile_m, c_pad), lambda i, k: (i, 0)),
                pl.BlockSpec((tile_m, h2_pad), lambda i, k: (i, 0)),
            ),
            scratch_shapes=[pltpu.VMEM((tile_m, h2_pad), jnp.float32)],
        ),
        compiler_params=cparams_2d,
    )(adj_p, p2, w3_p, b3_p)

    return logp_p[:n, :c], z1_p[:n, :h2]


def gnn_reference(x, adj, w1, b1, w2, b2, w3, b3):
    hp = jax.lax.Precision.HIGHEST
    p1 = jnp.dot(x, w1, precision=hp) + b1
    h = jnp.maximum(jnp.dot(adj, p1, precision=hp), 0.0)
    p2 = jnp.dot(h, w2, precision=hp) + b2
    z1 = jnp.maximum(jnp.dot(adj, p2, precision=hp), 0.0)
    logits = jnp.dot(z1, w3, precision=hp) + b3
    return jax.nn.log_softmax(logits, axis=1), z1


if __name__ == "__main__":
    # Small-but-representative shapes: N nodes, n_feat -> n_h1 -> n_h2 -> n_class.
    N, n_feat, n_h1, n_h2, n_class = 512, 96, 48, 64, 7

    key = jax.random.PRNGKey(0)
    ks = jax.random.split(key, 8)

    x = jax.random.normal(ks[0], (N, n_feat), jnp.float32)
    # symmetric, row-normalized dense adjacency with self loops
    a = (jax.random.uniform(ks[1], (N, N)) > 0.9).astype(jnp.float32)
    adj = a + a.T + jnp.eye(N, dtype=jnp.float32)
    adj = adj / jnp.sum(adj, axis=1, keepdims=True)

    def linear_init(k, fan_in, fan_out):
        bound = 1.0 / jnp.sqrt(fan_in)
        kw, kb = jax.random.split(k)
        w = jax.random.uniform(kw, (fan_in, fan_out), jnp.float32, -bound, bound)
        b = jax.random.uniform(kb, (1, fan_out), jnp.float32, -bound, bound)
        return w, b

    w1, b1 = linear_init(ks[2], n_feat, n_h1)
    w2, b2 = linear_init(ks[3], n_h1, n_h2)
    w3, b3 = linear_init(ks[4], n_h2, n_class)

    logp, z1 = gnn_forward(x, adj, w1, b1, w2, b2, w3, b3)
    jax.block_until_ready((logp, z1))

    logp_ref, z1_ref = gnn_reference(x, adj, w1, b1, w2, b2, w3, b3)
    # Tolerances loosened vs the pure-f32 reference: adj, activations AND weights
    # are bf16 on the MXU (f32 accumulation).
    assert jnp.allclose(logp, logp_ref, atol=5e-2, rtol=5e-2), (
        "logp mismatch, max |diff| = %g" % float(jnp.max(jnp.abs(logp - logp_ref))))
    assert jnp.allclose(z1, z1_ref, atol=5e-2, rtol=5e-2), (
        "z1 mismatch, max |diff| = %g" % float(jnp.max(jnp.abs(z1 - z1_ref))))
    assert logp.shape == (N, n_class) and z1.shape == (N, n_h2)

    print("KERNEL_OK")
</pallas_src>

<mosaic_0001>
module attributes {stable_mosaic.version = 11 : i64} {
  func.func @_linear_kernel(%arg0: i32, %arg1: memref<256x128xbf16, #tpu.memory_space<vmem>>, %arg2: memref<128x128xbf16, #tpu.memory_space<vmem>>, %arg3: memref<1x128xf32, #tpu.memory_space<vmem>>, %arg4: memref<256x128xbf16, #tpu.memory_space<vmem>>) attributes {dimension_semantics = [#tpu.dimension_semantics<parallel>], iteration_bounds = array<i64: 2>, scalar_prefetch = 0 : i64, scratch_operands = 0 : i64, tpu.core_type = #tpu.core_type<tc>, window_params = [{transform_indices = @transform_0, window_bounds = array<i64: 256, 128>}, {pipeline_mode = #tpu.pipeline_mode<synchronous>, transform_indices = @transform_1, window_bounds = array<i64: 128, 128>}, {pipeline_mode = #tpu.pipeline_mode<synchronous>, transform_indices = @transform_2, window_bounds = array<i64: 1, 128>}, {transform_indices = @transform_3, window_bounds = array<i64: 256, 128>}]} {
    %c0 = arith.constant 0 : index
    %c0_0 = arith.constant 0 : index
    %0 = vector.load %arg1[%c0, %c0_0] : memref<256x128xbf16, #tpu.memory_space<vmem>>, vector<256x128xbf16>
    %c0_1 = arith.constant 0 : index
    %c0_2 = arith.constant 0 : index
    %1 = vector.load %arg2[%c0_1, %c0_2] : memref<128x128xbf16, #tpu.memory_space<vmem>>, vector<128x128xbf16>
    %cst = arith.constant dense<0.000000e+00> : vector<256x128xf32>
    %2 = tpu.matmul %0, %1, %cst {dimension_numbers = #tpu.dot_dimension_numbers<[1], [0], [0], [1], [0, 0, 1, 1], [], []>} : vector<256x128xbf16>, vector<128x128xbf16>, vector<256x128xf32> -> vector<256x128xf32>
    %c0_3 = arith.constant 0 : index
    %c0_4 = arith.constant 0 : index
    %3 = vector.load %arg3[%c0_3, %c0_4] : memref<1x128xf32, #tpu.memory_space<vmem>>, vector<1x128xf32>
    %4 = vector.broadcast %3 : vector<1x128xf32> to vector<256x128xf32>
    %5 = arith.addf %2, %4 : vector<256x128xf32>
    %6 = arith.truncf %5 : vector<256x128xf32> to vector<256x128xbf16>
    %c0_5 = arith.constant 0 : index
    %c0_6 = arith.constant 0 : index
    %7 = vector.load %arg4[%c0_5, %c0_6] : memref<256x128xbf16, #tpu.memory_space<vmem>>, vector<256x128xbf16>
    tpu.vector_store %arg4[%c0_5, %c0_6], %6 {strides = array<i32>} : memref<256x128xbf16, #tpu.memory_space<vmem>>, vector<256x128xbf16>,
    return
  }
  func.func @transform_0(%arg0: i32) -> (i32, i32) {
    %c0_i32 = arith.constant 0 : i32
    %c0_i32_0 = arith.constant 0 : i32
    return %arg0, %c0_i32 : i32, i32
  }
  func.func @transform_1(%arg0: i32) -> (i32, i32) {
    %c0_i32 = arith.constant 0 : i32
    %c0_i32_0 = arith.constant 0 : i32
    %c0_i32_1 = arith.constant 0 : i32
    return %c0_i32, %c0_i32_0 : i32, i32
  }
  func.func @transform_2(%arg0: i32) -> (i32, i32) {
    %c0_i32 = arith.constant 0 : i32
    %c0_i32_0 = arith.constant 0 : i32
    %c0_i32_1 = arith.constant 0 : i32
    return %c0_i32, %c0_i32_0 : i32, i32
  }
  func.func @transform_3(%arg0: i32) -> (i32, i32) {
    %c0_i32 = arith.constant 0 : i32
    %c0_i32_0 = arith.constant 0 : i32
    return %arg0, %c0_i32 : i32, i32
  }
}

</mosaic_0001>

<llo_original>
// kernel: tpu_custom_call.1
$region0: #{tpu_custom_call.1}
  #allocation0 [shape = 'u32[]', space=smem, size = 0x4, offset = 0x4, fixed_abs, tag = 'smem constant byte address 0x4 - core index']
  #allocation1 [shape = 'u32[144,128]{1,0:T(1,128)}', space=vmem, size = 0x12000, scoped, tag = 'internal scratch']
  %s0 = inlined_call_operand.hbm [shape: bf16[512,128], index: 0, kind: input, shape index: {}]
  %s1 = inlined_call_operand.hbm [shape: bf16[128,128], index: 1, kind: input, shape index: {}]
  %s2 = inlined_call_operand.vmem [shape: f32[1,128], index: 2, kind: input, shape index: {}]
  %s3 = inlined_call_operand.hbm [shape: bf16[512,128], index: 3, kind: output, shape index: {}]
  %s4 = sld [smem:[#allocation0]]
  $region53: #{tpu_custom_call.1} parent=0
    _
  %s6 = ssub.s32 1, %s4
  %s7 = scalar_select 0, %s6, %s4
  $region1: #{tpu_custom_call.1} parent=0
    #allocation2 [shape = 'u8[131072]{0}', space=vmem, size = 0x20000, scoped, tag = 'input window, operand 0']
    #allocation3 [shape = 's32[2]{0}', space=sflag, size = 0x8, scoped, tag = 'scoped memory for tpu_custom_call.1']
    #allocation4 [shape = 's32[2]{0}', space=sflag, size = 0x8, scoped, tag = 'scoped memory for tpu_custom_call.1']
    #allocation5 [shape = 'u8[32768]{0}', space=vmem, size = 0x8000, scoped, tag = 'input window, operand 1, single buffered']
    #allocation6 [shape = 's32[1]{0}', space=sflag, size = 0x4, scoped, tag = 'scoped memory for tpu_custom_call.1']
    #allocation7 [shape = 'u8[131072]{0}', space=vmem, size = 0x20000, scoped, tag = 'output window, operand 0']
    %8 = vsyncpa [#allocation3], 0
    %s9 = scalar_lea.sflag [#allocation3], 1
    %10 = vsyncpa %s9, 0
    %11 = vsyncpa [#allocation6], 0
    %12 = vsyncpa [#allocation4], 0
    %s13 = scalar_lea.sflag [#allocation4], 1
    %14 = vsyncpa %s13, 0
    loop: start=0, step=1, limit=4
    $region2: #{tpu_custom_call.1} parent=1 // loop_pre_header
      _
    $region3: #{tpu_custom_call.1} parent=1 // loop_header
      %s16 = sphi 0, %s20
      %p17 = scmp.ge.s32.totalorder %s16, 4
      %s26 = sphi 0, %s28
      %s29 = sphi 0, %s26
      %s30 = sphi 0, %s29
      %s46 = sphi 0, %s30
      %s50 = sphi 0, %s50
      %s52 = sphi 0, %s50
      %s53 = sphi 0, %s52
      %s67 = sphi 0, %s53
      %s71 = sphi 0, %s71
      %s73 = sphi 0, %s71
      %s74 = sphi 0, %s73
      %s88 = sphi 0, %s74
      %s94 = sphi 0, %s96
      %s97 = sphi 0, %s94
      %s98 = sphi 0, %s97
      %s114 = sphi 0, %s98
    $region4: #{tpu_custom_call.1} parent=1 // loop_header_branch
      %19 = sbr.rel (%p17) target = $region8
    $region5: #{tpu_custom_call.1} parent=1 // loop_body
      %s21 = ssub.s32 %s16, 1
      %s22 = ssub.s32 %s16, 2
      %s23 = sadd.s32 %s16, 1
      %s24 = ssub.s32 %s16, %s23
      %p25 = scmp.eq.s32.totalorder %s24, 0
      %s27 = sadd.s32 %s26, 1
      %s28 = scalar_select %p25, %s26, %s27
      %p31 = pneg %p25
      %p32 = scmp.eq.s32.totalorder %s16, 1
      %p33 = por %p31, %p32
      %p34 = scmp.ne.s32.totalorder %s26, %s29
      %p35 = scmp.eq.s32.totalorder %s16, 0
      %p36 = por %p34, %p35
      %p37 = scmp.ne.s32.totalorder %s26, %s29
      %p38 = scmp.eq.s32.totalorder %s21, 1
      %p39 = por %p37, %p38
      %p40 = scmp.ne.s32.totalorder %s29, %s30
      %p41 = scmp.eq.s32.totalorder %s21, 0
      %p42 = por %p40, %p41
      %p43 = scmp.ne.s32.totalorder %s29, %s30
      %p44 = scmp.eq.s32.totalorder %s22, 1
      %p45 = por %p43, %p44
      %p47 = scmp.ne.s32.totalorder %s30, %s46
      %p48 = scmp.eq.s32.totalorder %s22, 0
      %p49 = por %p47, %p48
      %s51 = sadd.s32 %s50, 1
      %p54 = scmp.eq.s32.totalorder %s16, 1
      %p55 = scmp.ne.s32.totalorder %s50, %s52
      %p56 = scmp.eq.s32.totalorder %s16, 0
      %p57 = por %p55, %p56
      %p58 = scmp.ne.s32.totalorder %s50, %s52
      %p59 = scmp.eq.s32.totalorder %s21, 1
      %p60 = por %p58, %p59
      %p61 = scmp.ne.s32.totalorder %s52, %s53
      %p62 = scmp.eq.s32.totalorder %s21, 0
      %p63 = por %p61, %p62
      %p64 = scmp.ne.s32.totalorder %s52, %s53
      %p65 = scmp.eq.s32.totalorder %s22, 1
      %p66 = por %p64, %p65
      %p68 = scmp.ne.s32.totalorder %s53, %s67
      %p69 = scmp.eq.s32.totalorder %s22, 0
      %p70 = por %p68, %p69
      %s72 = sadd.s32 %s71, 1
      %p75 = scmp.eq.s32.totalorder %s16, 1
      %p76 = scmp.ne.s32.totalorder %s71, %s73
      %p77 = scmp.eq.s32.totalorder %s16, 0
      %p78 = por %p76, %p77
      %p79 = scmp.ne.s32.totalorder %s71, %s73
      %p80 = scmp.eq.s32.totalorder %s21, 1
      %p81 = por %p79, %p80
      %p82 = scmp.ne.s32.totalorder %s73, %s74
      %p83 = scmp.eq.s32.totalorder %s21, 0
      %p84 = por %p82, %p83
      %p85 = scmp.ne.s32.totalorder %s73, %s74
      %p86 = scmp.eq.s32.totalorder %s22, 1
      %p87 = por %p85, %p86
      %p89 = scmp.ne.s32.totalorder %s74, %s88
      %p90 = scmp.eq.s32.totalorder %s22, 0
      %p91 = por %p89, %p90
      %s92 = ssub.s32 %s16, %s23
      %p93 = scmp.eq.s32.totalorder %s92, 0
      %s95 = sadd.s32 %s94, 1
      %s96 = scalar_select %p93, %s94, %s95
      %p99 = pneg %p93
      %p100 = scmp.eq.s32.totalorder %s16, 1
      %p101 = por %p99, %p100
      %p102 = scmp.ne.s32.totalorder %s94, %s97
      %p103 = scmp.eq.s32.totalorder %s16, 0
      %p104 = por %p102, %p103
      %p105 = scmp.ne.s32.totalorder %s94, %s97
      %p106 = scmp.eq.s32.totalorder %s21, 1
      %p107 = por %p105, %p106
      %p108 = scmp.ne.s32.totalorder %s97, %s98
      %p109 = scmp.eq.s32.totalorder %s21, 0
      %p110 = por %p108, %p109
      %p111 = scmp.ne.s32.totalorder %s97, %s98
      %p112 = scmp.eq.s32.totalorder %s22, 1
      %p113 = por %p111, %p112
      %p115 = scmp.ne.s32.totalorder %s98, %s114
      %p116 = scmp.eq.s32.totalorder %s22, 0
      %p117 = por %p115, %p116
      %p118 = scmp.le.s32.totalorder 1, %s16
      %p119 = scmp.lt.s32.totalorder %s16, 3
      %p120 = pnand %p118, %p119
      %p121 = pneg %p120
      // Predicated region
      $region9: #{tpu_custom_call.1} parent=5 // pred_check
        _
      $region10: #{tpu_custom_call.1} parent=5 // pred_check_branch
        %123 = sbr.rel (%p120) target = $region12
      $region11: #{tpu_custom_call.1} parent=5 // pred_region
        %s124 = ssub.s32 %s16, 1
        // Predicated region
        $region13: #{tpu_custom_call.1} parent=11 // pred_check
          %p125 = pneg %p63
        $region14: #{tpu_custom_call.1} parent=11 // pred_check_branch
          %127 = sbr.rel (%p125) target = $region16
        $region15: #{tpu_custom_call.1} parent=11 // pred_region
          %s129 = ssub.s32 1024, 1024
          %130 = vsyncadd [#allocation6], %s129
          %s131 = sshll.u32 [#allocation5], 4
          %s132 = int_to_ptr.vmem [resolvable:$true] %s131
          %137 = dma.hbm_to_vmem [thread:$0]  %s1, 1024, %s132, [#allocation6], 64, 64, 4
        $region16: #{tpu_custom_call.1} parent=11 // pred_fallthru
          _
        // Predicated region
        $region17: #{tpu_custom_call.1} parent=11 // pred_check
          %p138 = pneg %p84
        $region18: #{tpu_custom_call.1} parent=11 // pred_check_branch
          %140 = sbr.rel (%p138) target = $region20
        $region19: #{tpu_custom_call.1} parent=11 // pred_region
          _
        $region20: #{tpu_custom_call.1} parent=11 // pred_fallthru
          _
      $region12: #{tpu_custom_call.1} parent=5 // pred_fallthru
        _
      %p141 = scmp.lt.s32.totalorder %s16, 2
      // Predicated region
      $region21: #{tpu_custom_call.1} parent=5 // pred_check
        %p142 = pneg %p141
      $region22: #{tpu_custom_call.1} parent=5 // pred_check_branch
        %144 = sbr.rel (%p142) target = $region24
      $region23: #{tpu_custom_call.1} parent=5 // pred_region
        // Predicated region
        $region25: #{tpu_custom_call.1} parent=23 // pred_check
          %p145 = pneg %p36
        $region26: #{tpu_custom_call.1} parent=23 // pred_check_branch
          %147 = sbr.rel (%p145) target = $region28
        $region27: #{tpu_custom_call.1} parent=23 // pred_region
          %s148 = sand.u32 %s26, 1
          %s149 = scalar_lea.sflag [#allocation3], %s148
          %s150 = sand.u32 %s26, 1
          %s151 = smul.addr %s150, 128
          %s152 = scalar_lea.vmem [#allocation2], %s151
          %s153 = smul.u32 32, %s16
          %s155 = ssub.s32 2048, 2048
          %156 = vsyncadd %s149, %s155
          %s157 = smul.addr %s153, 64
          %s158 = scalar_lea.hbm %s0, %s157
          %s159 = sshll.u32 %s152, 4
          %s160 = int_to_ptr.vmem [resolvable:$true] %s159
          %165 = dma.hbm_to_vmem [thread:$0]  %s158, 2048, %s160, %s149, 64, 64, 4
        $region28: #{tpu_custom_call.1} parent=23 // pred_fallthru
          _
      $region24: #{tpu_custom_call.1} parent=5 // pred_fallthru
        _
      %p166 = scmp.le.s32.totalorder 1, %s16
      %p167 = scmp.lt.s32.totalorder %s16, 3
      %p168 = pnand %p166, %p167
      %p169 = pneg %p168
      // Predicated region
      $region29: #{tpu_custom_call.1} parent=5 // pred_check
        _
      $region30: #{tpu_custom_call.1} parent=5 // pred_check_branch
        %171 = sbr.rel (%p168) target = $region32
      $region31: #{tpu_custom_call.1} parent=5 // pred_region
        %s172 = ssub.s32 %s16, 1
        %s173 = sand.u32 %s29, 1
        %s174 = scalar_lea.sflag [#allocation3], %s173
        %s175 = sand.u32 %s29, 1
        %s176 = smul.addr %s175, 128
        %s177 = scalar_lea.vmem [#allocation2], %s176
        // Predicated region
        $region33: #{tpu_custom_call.1} parent=31 // pred_check
          %p178 = pneg %p42
        $region34: #{tpu_custom_call.1} parent=31 // pred_check_branch
          %180 = sbr.rel (%p178) target = $region36
        $region35: #{tpu_custom_call.1} parent=31 // pred_region
          %181 = dma.done %s174, 2048
        $region36: #{tpu_custom_call.1} parent=31 // pred_fallthru
          _
        // Predicated region
        $region37: #{tpu_custom_call.1} parent=31 // pred_check
          %p182 = pneg %p63
        $region38: #{tpu_custom_call.1} parent=31 // pred_check_branch
          %184 = sbr.rel (%p182) target = $region40
        $region39: #{tpu_custom_call.1} parent=31 // pred_region
          %185 = dma.done [#allocation6], 1024
        $region40: #{tpu_custom_call.1} parent=31 // pred_fallthru
          _
        %s186 = sand.u32 %s29, 1
        %s187 = scalar_lea.sflag [#allocation3], %s186
        %s188 = sand.u32 %s29, 1
        %s189 = smul.addr %s188, 128
        %s190 = scalar_lea.vmem [#allocation2], %s189
        %p191 = pneg %p42
        %p192 = pneg %p39
        %p193 = pneg %p63
        %p194 = pneg %p60
        %p195 = pneg %p84
        %p196 = pneg %p81
        %p197 = pneg %p110
        %p198 = pneg %p107
        %s199 = sand.u32 %s97, 1
        %s200 = scalar_lea.sflag [#allocation4], %s199
        %s201 = sand.u32 %s97, 1
        %s202 = smul.addr %s201, 128
        %s203 = scalar_lea.vmem [#allocation7], %s202
        %s204 = smul.u32 32, %s21
        %s205 = smul.u32 32, %s21
        %v207 = vld [vmem:[%s177] sm:$0xf]
        %v208 = vld [vmem:[%s177 + $0x4] sm:$0xf]
        %v209 = vld [vmem:[%s177 + $0x8] sm:$0xf]
        %v210 = vld [vmem:[%s177 + $0xc] sm:$0xf]
        %v211 = vld [vmem:[%s177 + $0x10] sm:$0xf]
        %v212 = vld [vmem:[%s177 + $0x14] sm:$0xf]
        %v213 = vld [vmem:[%s177 + $0x18] sm:$0xf]
        %v214 = vld [vmem:[%s177 + $0x1c] sm:$0xf]
        %v215 = vld [vmem:[%s177 + $0x20] sm:$0xf]
        %v216 = vld [vmem:[%s177 + $0x24] sm:$0xf]
        %v217 = vld [vmem:[%s177 + $0x28] sm:$0xf]
        %v218 = vld [vmem:[%s177 + $0x2c] sm:$0xf]
        %v219 = vld [vmem:[%s177 + $0x30] sm:$0xf]
        %v220 = vld [vmem:[%s177 + $0x34] sm:$0xf]
        %v221 = vld [vmem:[%s177 + $0x38] sm:$0xf]
        %v222 = vld [vmem:[%s177 + $0x3c] sm:$0xf]
        %v223 = vld [vmem:[%s177 + $0x40] sm:$0xf]
        %v224 = vld [vmem:[%s177 + $0x44] sm:$0xf]
        %v225 = vld [vmem:[%s177 + $0x48] sm:$0xf]
        %v226 = vld [vmem:[%s177 + $0x4c] sm:$0xf]
        %v227 = vld [vmem:[%s177 + $0x50] sm:$0xf]
        %v228 = vld [vmem:[%s177 + $0x54] sm:$0xf]
        %v229 = vld [vmem:[%s177 + $0x58] sm:$0xf]
        %v230 = vld [vmem:[%s177 + $0x5c] sm:$0xf]
        %v231 = vld [vmem:[%s177 + $0x60] sm:$0xf]
        %v232 = vld [vmem:[%s177 + $0x64] sm:$0xf]
        %v233 = vld [vmem:[%s177 + $0x68] sm:$0xf]
        %v234 = vld [vmem:[%s177 + $0x6c] sm:$0xf]
        %v235 = vld [vmem:[%s177 + $0x70] sm:$0xf]
        %v236 = vld [vmem:[%s177 + $0x74] sm:$0xf]
        %v237 = vld [vmem:[%s177 + $0x78] sm:$0xf]
        %v238 = vld [vmem:[%s177 + $0x7c] sm:$0xf]
        %v239 = vld [vmem:[#allocation5] sm:$0xf]
        %v240 = vld [vmem:[#allocation5 + $0x4] sm:$0xf]
        %v241 = vld [vmem:[#allocation5 + $0x8] sm:$0xf]
        %v242 = vld [vmem:[#allocation5 + $0xc] sm:$0xf]
        %v243 = vld [vmem:[#allocation5 + $0x10] sm:$0xf]
        %v244 = vld [vmem:[#allocation5 + $0x14] sm:$0xf]
        %v245 = vld [vmem:[#allocation5 + $0x18] sm:$0xf]
        %v246 = vld [vmem:[#allocation5 + $0x1c] sm:$0xf]
        %v247 = vld [vmem:[#allocation5 + $0x20] sm:$0xf]
        %v248 = vld [vmem:[#allocation5 + $0x24] sm:$0xf]
        %v249 = vld [vmem:[#allocation5 + $0x28] sm:$0xf]
        %v250 = vld [vmem:[#allocation5 + $0x2c] sm:$0xf]
        %v251 = vld [vmem:[#allocation5 + $0x30] sm:$0xf]
        %v252 = vld [vmem:[#allocation5 + $0x34] sm:$0xf]
        %v253 = vld [vmem:[#allocation5 + $0x38] sm:$0xf]
        %v254 = vld [vmem:[#allocation5 + $0x3c] sm:$0xf]
        %v255 = vld [vmem:[%s2] sm:$0x1]
        %v257 = vlaneseq
        %v258 = vshrl.u32 %v257, 7
        %v259 = vsub.s32 0, %v258
        %v260 = vrot.slane %v255, %v259
        %v294 = vunpack.c.l.b16 %v207
        %v295 = vunpack.c.l.b16 %v208
        %v296 = vunpack.c.l.b16 %v209
        %v297 = vunpack.c.l.b16 %v210
        %v298 = vunpack.c.l.b16 %v211
        %v299 = vunpack.c.l.b16 %v212
        %v300 = vunpack.c.l.b16 %v213
        %v301 = vunpack.c.l.b16 %v214
        %v302 = vunpack.c.l.b16 %v215
        %v303 = vunpack.c.l.b16 %v216
        %v304 = vunpack.c.l.b16 %v217
        %v305 = vunpack.c.l.b16 %v218
        %v306 = vunpack.c.l.b16 %v219
        %v307 = vunpack.c.l.b16 %v220
        %v308 = vunpack.c.l.b16 %v221
        %v309 = vunpack.c.l.b16 %v222
        %v310 = vunpack.c.l.b16 %v223
        %v311 = vunpack.c.l.b16 %v224
        %v312 = vunpack.c.l.b16 %v225
        %v313 = vunpack.c.l.b16 %v226
        %v314 = vunpack.c.l.b16 %v227
        %v315 = vunpack.c.l.b16 %v228
        %v316 = vunpack.c.l.b16 %v229
        %v317 = vunpack.c.l.b16 %v230
        %v318 = vunpack.c.l.b16 %v231
        %v319 = vunpack.c.l.b16 %v232
        %v320 = vunpack.c.l.b16 %v233
        %v321 = vunpack.c.l.b16 %v234
        %v322 = vunpack.c.l.b16 %v235
        %v323 = vunpack.c.l.b16 %v236
        %v324 = vunpack.c.l.b16 %v237
        %v325 = vunpack.c.l.b16 %v238
        %v326 = vpack.c.b16 %v295, %v294
        %v327 = vpack.c.b16 %v297, %v296
        %v328 = vpack.c.b16 %v299, %v298
        %v329 = vpack.c.b16 %v301, %v300
        %v330 = vpack.c.b16 %v303, %v302
        %v331 = vpack.c.b16 %v305, %v304
        %v332 = vpack.c.b16 %v307, %v306
        %v333 = vpack.c.b16 %v309, %v308
        %v334 = vpack.c.b16 %v311, %v310
        %v335 = vpack.c.b16 %v313, %v312
        %v336 = vpack.c.b16 %v315, %v314
        %v337 = vpack.c.b16 %v317, %v316
        %v338 = vpack.c.b16 %v319, %v318
        %v339 = vpack.c.b16 %v321, %v320
        %v340 = vpack.c.b16 %v323, %v322
        %v341 = vpack.c.b16 %v325, %v324
        %v374 = vunpack.c.l.b16 %v239
        %v375 = vunpack.c.l.b16 %v240
        %v376 = vunpack.c.l.b16 %v241
        %v377 = vunpack.c.l.b16 %v242
        %v378 = vunpack.c.l.b16 %v243
        %v379 = vunpack.c.l.b16 %v244
        %v380 = vunpack.c.l.b16 %v245
        %v381 = vunpack.c.l.b16 %v246
        %v382 = vunpack.c.l.b16 %v247
        %v383 = vunpack.c.l.b16 %v248
        %v384 = vunpack.c.l.b16 %v249
        %v385 = vunpack.c.l.b16 %v250
        %v386 = vunpack.c.l.b16 %v251
        %v387 = vunpack.c.l.b16 %v252
        %v388 = vunpack.c.l.b16 %v253
        %v389 = vunpack.c.l.b16 %v254
        %v390 = vpack.c.b16 %v375, %v374
        %v391 = vpack.c.b16 %v377, %v376
        %v392 = vpack.c.b16 %v379, %v378
        %v393 = vpack.c.b16 %v381, %v380
        %v394 = vpack.c.b16 %v383, %v382
        %v395 = vpack.c.b16 %v385, %v384
        %v396 = vpack.c.b16 %v387, %v386
        %v397 = vpack.c.b16 %v389, %v388
        %406 = vmatprep.subr.bf16.mxu0 0
        %407 = vmatpush1.bf16.msra.mxu0 %v390
        %408 = vmatprep.subr.bf16.mxu0 0
        %409 = vmatpush1.bf16.msra.mxu0 %v391
        %410 = vmatprep.subr.bf16.mxu0 0
        %411 = vmatpush1.bf16.msra.mxu0 %v392
        %412 = vmatprep.subr.bf16.mxu0 0
        %413 = vmatpush1.bf16.msra.mxu0 %v393
        %414 = vmatprep.subr.bf16.mxu0 0
        %415 = vmatpush1.bf16.msra.mxu0 %v394
        %416 = vmatprep.subr.bf16.mxu0 0
        %417 = vmatpush1.bf16.msra.mxu0 %v395
        %418 = vmatprep.subr.bf16.mxu0 0
        %419 = vmatpush1.bf16.msra.mxu0 %v396
        %420 = vmatprep.subr.bf16.mxu0 0
        %421 = vmatpush1.bf16.msra.mxu0 %v397
        %422 = vmatprep.subr.bf16.mxu0 0
        %423 = vmatpush1.bf16.msra.mxu0 0
        %424 = vmatprep.subr.bf16.mxu0 0
        %425 = vmatpush1.bf16.msra.mxu0 0
        %426 = vmatprep.subr.bf16.mxu0 0
        %427 = vmatpush1.bf16.msra.mxu0 0
        %428 = vmatprep.subr.bf16.mxu0 0
        %429 = vmatpush1.bf16.msra.mxu0 0
        %430 = vmatprep.subr.bf16.mxu0 0
        %431 = vmatpush1.bf16.msra.mxu0 0
        %432 = vmatprep.subr.bf16.mxu0 0
        %433 = vmatpush1.bf16.msra.mxu0 0
        %434 = vmatprep.subr.bf16.mxu0 0
        %435 = vmatpush1.bf16.msra.mxu0 0
        %436 = vmatprep.subr.bf16.mxu0 0
        %437 = vmatpush1.bf16.msra.mxu0 0
        %438 = vmatprep.mubr.bf16.mxu0 0
        %439 = vmatmul.mubr.bf16.gmra.mrb[0].mxu0 %v326
        %v440 = vpop.f32.mrb[0].mxu0
        %v441 = vadd.f32 %v260, %v440
        %v442 = vpop.f32.mrb[0].mxu0
        %v443 = vpop.f32.mrb[0].mxu0
        %v444 = vadd.f32 %v260, %v443
        %v445 = vpop.f32.mrb[0].mxu0
        %446 = vmatprep.mubr.bf16.mxu0 0
        %447 = vmatmul.mubr.bf16.gmra.mrb[0].mxu0 %v327
        %v448 = vpop.f32.mrb[0].mxu0
        %v449 = vadd.f32 %v260, %v448
        %v450 = vpop.f32.mrb[0].mxu0
        %v451 = vpop.f32.mrb[0].mxu0
        %v452 = vadd.f32 %v260, %v451
        %v453 = vpop.f32.mrb[0].mxu0
        %454 = vmatprep.mubr.bf16.mxu0 0
        %455 = vmatmul.mubr.bf16.gmra.mrb[0].mxu0 %v328
        %v456 = vpop.f32.mrb[0].mxu0
        %v457 = vadd.f32 %v260, %v456
        %v458 = vpop.f32.mrb[0].mxu0
        %v459 = vpop.f32.mrb[0].mxu0
        %v460 = vadd.f32 %v260, %v459
        %v461 = vpop.f32.mrb[0].mxu0
        %462 = vmatprep.mubr.bf16.mxu0 0
        %463 = vmatmul.mubr.bf16.gmra.mrb[0].mxu0 %v329
        %v464 = vpop.f32.mrb[0].mxu0
        %v465 = vadd.f32 %v260, %v464
        %v466 = vpop.f32.mrb[0].mxu0
        %v467 = vpop.f32.mrb[0].mxu0
        %v468 = vadd.f32 %v260, %v467
        %v469 = vpop.f32.mrb[0].mxu0
        %470 = vmatprep.mubr.bf16.mxu0 0
        %471 = vmatmul.mubr.bf16.gmra.mrb[0].mxu0 %v330
        %v472 = vpop.f32.mrb[0].mxu0
        %v473 = vadd.f32 %v260, %v472
        %v474 = vpop.f32.mrb[0].mxu0
        %v475 = vpop.f32.mrb[0].mxu0
        %v476 = vadd.f32 %v260, %v475
        %v477 = vpop.f32.mrb[0].mxu0
        %478 = vmatprep.mubr.bf16.mxu0 0
        %479 = vmatmul.mubr.bf16.gmra.mrb[0].mxu0 %v331
        %v480 = vpop.f32.mrb[0].mxu0
        %v481 = vadd.f32 %v260, %v480
        %v482 = vpop.f32.mrb[0].mxu0
        %v483 = vpop.f32.mrb[0].mxu0
        %v484 = vadd.f32 %v260, %v483
        %v485 = vpop.f32.mrb[0].mxu0
        %486 = vmatprep.mubr.bf16.mxu0 0
        %487 = vmatmul.mubr.bf16.gmra.mrb[0].mxu0 %v332
        %v488 = vpop.f32.mrb[0].mxu0
        %v489 = vadd.f32 %v260, %v488
        %v490 = vpop.f32.mrb[0].mxu0
        %v491 = vpop.f32.mrb[0].mxu0
        %v492 = vadd.f32 %v260, %v491
        %v493 = vpop.f32.mrb[0].mxu0
        %494 = vmatprep.mubr.bf16.mxu0 0
        %495 = vmatmul.mubr.bf16.gmra.mrb[0].mxu0 %v333
        %v496 = vpop.f32.mrb[0].mxu0
        %v497 = vadd.f32 %v260, %v496
        %v498 = vpop.f32.mrb[0].mxu0
        %v499 = vpop.f32.mrb[0].mxu0
        %v500 = vadd.f32 %v260, %v499
        %v501 = vpop.f32.mrb[0].mxu0
        %502 = vmatprep.mubr.bf16.mxu0 0
        %503 = vmatmul.mubr.bf16.gmra.mrb[0].mxu0 %v334
        %v504 = vpop.f32.mrb[0].mxu0
        %v505 = vadd.f32 %v260, %v504
        %v506 = vpop.f32.mrb[0].mxu0
        %v507 = vpop.f32.mrb[0].mxu0
        %v508 = vadd.f32 %v260, %v507
        %v509 = vpop.f32.mrb[0].mxu0
        %510 = vmatprep.mubr.bf16.mxu0 0
        %511 = vmatmul.mubr.bf16.gmra.mrb[0].mxu0 %v335
        %v512 = vpop.f32.mrb[0].mxu0
        %v513 = vadd.f32 %v260, %v512
        %v514 = vpop.f32.mrb[0].mxu0
        %v515 = vpop.f32.mrb[0].mxu0
        %v516 = vadd.f32 %v260, %v515
        %v517 = vpop.f32.mrb[0].mxu0
        %518 = vmatprep.mubr.bf16.mxu0 0
        %519 = vmatmul.mubr.bf16.gmra.mrb[0].mxu0 %v336
        %v520 = vpop.f32.mrb[0].mxu0
        %v521 = vadd.f32 %v260, %v520
        %v522 = vpop.f32.mrb[0].mxu0
        %v523 = vpop.f32.mrb[0].mxu0
        %v524 = vadd.f32 %v260, %v523
        %v525 = vpop.f32.mrb[0].mxu0
        %526 = vmatprep.mubr.bf16.mxu0 0
        %527 = vmatmul.mubr.bf16.gmra.mrb[0].mxu0 %v337
        %v528 = vpop.f32.mrb[0].mxu0
        %v529 = vadd.f32 %v260, %v528
        %v530 = vpop.f32.mrb[0].mxu0
        %v531 = vpop.f32.mrb[0].mxu0
        %v532 = vadd.f32 %v260, %v531
        %v533 = vpop.f32.mrb[0].mxu0
        %534 = vmatprep.mubr.bf16.mxu0 0
        %535 = vmatmul.mubr.bf16.gmra.mrb[0].mxu0 %v338
        %v536 = vpop.f32.mrb[0].mxu0
        %v537 = vadd.f32 %v260, %v536
        %v538 = vpop.f32.mrb[0].mxu0
        %v539 = vpop.f32.mrb[0].mxu0
        %v540 = vadd.f32 %v260, %v539
        %v541 = vpop.f32.mrb[0].mxu0
        %542 = vmatprep.mubr.bf16.mxu0 0
        %543 = vmatmul.mubr.bf16.gmra.mrb[0].mxu0 %v339
        %v544 = vpop.f32.mrb[0].mxu0
        %v545 = vadd.f32 %v260, %v544
        %v546 = vpop.f32.mrb[0].mxu0
        %v547 = vpop.f32.mrb[0].mxu0
        %v548 = vadd.f32 %v260, %v547
        %v549 = vpop.f32.mrb[0].mxu0
        %550 = vmatprep.mubr.bf16.mxu0 0
        %551 = vmatmul.mubr.bf16.gmra.mrb[0].mxu0 %v340
        %v552 = vpop.f32.mrb[0].mxu0
        %v553 = vadd.f32 %v260, %v552
        %v554 = vpop.f32.mrb[0].mxu0
        %v555 = vpop.f32.mrb[0].mxu0
        %v556 = vadd.f32 %v260, %v555
        %v557 = vpop.f32.mrb[0].mxu0
        %558 = vmatprep.mubr.bf16.mxu0 0
        %559 = vmatmul.mubr.bf16.gmra.mrb[0].mxu0 %v341
        %v560 = vpop.f32.mrb[0].mxu0
        %v561 = vadd.f32 %v260, %v560
        %v562 = vpop.f32.mrb[0].mxu0
        %v563 = vpop.f32.mrb[0].mxu0
        %v564 = vadd.f32 %v260, %v563
        %v565 = vpop.f32.mrb[0].mxu0
        %566 = vdwg.mxu0
        %v567 = vpack.c.bf16 %v444, %v441
        %v568 = vpack.c.bf16 %v452, %v449
        %v569 = vpack.c.bf16 %v460, %v457
        %v570 = vpack.c.bf16 %v468, %v465
        %v571 = vpack.c.bf16 %v476, %v473
        %v572 = vpack.c.bf16 %v484, %v481
        %v573 = vpack.c.bf16 %v492, %v489
        %v574 = vpack.c.bf16 %v500, %v497
        %v575 = vpack.c.bf16 %v508, %v505
        %v576 = vpack.c.bf16 %v516, %v513
        %v577 = vpack.c.bf16 %v524, %v521
        %v578 = vpack.c.bf16 %v532, %v529
        %v579 = vpack.c.bf16 %v540, %v537
        %v580 = vpack.c.bf16 %v548, %v545
        %v581 = vpack.c.bf16 %v556, %v553
        %v582 = vpack.c.bf16 %v564, %v561
        %v599 = vunpack.c.l.b16 %v567
        %v600 = vunpack.c.h.b16 %v567
        %v601 = vunpack.c.l.b16 %v568
        %v602 = vunpack.c.h.b16 %v568
        %v603 = vunpack.c.l.b16 %v569
        %v604 = vunpack.c.h.b16 %v569
        %v605 = vunpack.c.l.b16 %v570
        %v606 = vunpack.c.h.b16 %v570
        %v607 = vunpack.c.l.b16 %v571
        %v608 = vunpack.c.h.b16 %v571
        %v609 = vunpack.c.l.b16 %v572
        %v610 = vunpack.c.h.b16 %v572
        %v611 = vunpack.c.l.b16 %v573
        %v612 = vunpack.c.h.b16 %v573
        %v613 = vunpack.c.l.b16 %v574
        %v614 = vunpack.c.h.b16 %v574
        %v615 = vunpack.c.l.b16 %v575
        %v616 = vunpack.c.h.b16 %v575
        %v617 = vunpack.c.l.b16 %v576
        %v618 = vunpack.c.h.b16 %v576
        %v619 = vunpack.c.l.b16 %v577
        %v620 = vunpack.c.h.b16 %v577
        %v621 = vunpack.c.l.b16 %v578
        %v622 = vunpack.c.h.b16 %v578
        %v623 = vunpack.c.l.b16 %v579
        %v624 = vunpack.c.h.b16 %v579
        %v625 = vunpack.c.l.b16 %v580
        %v626 = vunpack.c.h.b16 %v580
        %v627 = vunpack.c.l.b16 %v581
        %v628 = vunpack.c.h.b16 %v581
        %v629 = vunpack.c.l.b16 %v582
        %v630 = vunpack.c.h.b16 %v582
        %v631 = vpack.c.b16 %v599, %v599
        %v632 = vpack.c.b16 %v600, %v600
        %v633 = vpack.c.b16 %v601, %v601
        %v634 = vpack.c.b16 %v602, %v602
        %v635 = vpack.c.b16 %v603, %v603
        %v636 = vpack.c.b16 %v604, %v604
        %v637 = vpack.c.b16 %v605, %v605
        %v638 = vpack.c.b16 %v606, %v606
        %v639 = vpack.c.b16 %v607, %v607
        %v640 = vpack.c.b16 %v608, %v608
        %v641 = vpack.c.b16 %v609, %v609
        %v642 = vpack.c.b16 %v610, %v610
        %v643 = vpack.c.b16 %v611, %v611
        %v644 = vpack.c.b16 %v612, %v612
        %v645 = vpack.c.b16 %v613, %v613
        %v646 = vpack.c.b16 %v614, %v614
        %v647 = vpack.c.b16 %v615, %v615
        %v648 = vpack.c.b16 %v616, %v616
        %v649 = vpack.c.b16 %v617, %v617
        %v650 = vpack.c.b16 %v618, %v618
        %v651 = vpack.c.b16 %v619, %v619
        %v652 = vpack.c.b16 %v620, %v620
        %v653 = vpack.c.b16 %v621, %v621
        %v654 = vpack.c.b16 %v622, %v622
        %v655 = vpack.c.b16 %v623, %v623
        %v656 = vpack.c.b16 %v624, %v624
        %v657 = vpack.c.b16 %v625, %v625
        %v658 = vpack.c.b16 %v626, %v626
        %v659 = vpack.c.b16 %v627, %v627
        %v660 = vpack.c.b16 %v628, %v628
        %v661 = vpack.c.b16 %v629, %v629
        %v662 = vpack.c.b16 %v630, %v630
        %695 = vst [vmem:[%s203] sm:$0xf] %v631
        %696 = vst [vmem:[%s203 + $0x4] sm:$0xf] %v632
        %697 = vst [vmem:[%s203 + $0x8] sm:$0xf] %v633
        %698 = vst [vmem:[%s203 + $0xc] sm:$0xf] %v634
        %699 = vst [vmem:[%s203 + $0x10] sm:$0xf] %v635
        %700 = vst [vmem:[%s203 + $0x14] sm:$0xf] %v636
        %701 = vst [vmem:[%s203 + $0x18] sm:$0xf] %v637
        %702 = vst [vmem:[%s203 + $0x1c] sm:$0xf] %v638
        %703 = vst [vmem:[%s203 + $0x20] sm:$0xf] %v639
        %704 = vst [vmem:[%s203 + $0x24] sm:$0xf] %v640
        %705 = vst [vmem:[%s203 + $0x28] sm:$0xf] %v641
        %706 = vst [vmem:[%s203 + $0x2c] sm:$0xf] %v642
        %707 = vst [vmem:[%s203 + $0x30] sm:$0xf] %v643
        %708 = vst [vmem:[%s203 + $0x34] sm:$0xf] %v644
        %709 = vst [vmem:[%s203 + $0x38] sm:$0xf] %v645
        %710 = vst [vmem:[%s203 + $0x3c] sm:$0xf] %v646
        %711 = vst [vmem:[%s203 + $0x40] sm:$0xf] %v647
        %712 = vst [vmem:[%s203 + $0x44] sm:$0xf] %v648
        %713 = vst [vmem:[%s203 + $0x48] sm:$0xf] %v649
        %714 = vst [vmem:[%s203 + $0x4c] sm:$0xf] %v650
        %715 = vst [vmem:[%s203 + $0x50] sm:$0xf] %v651
        %716 = vst [vmem:[%s203 + $0x54] sm:$0xf] %v652
        %717 = vst [vmem:[%s203 + $0x58] sm:$0xf] %v653
        %718 = vst [vmem:[%s203 + $0x5c] sm:$0xf] %v654
        %719 = vst [vmem:[%s203 + $0x60] sm:$0xf] %v655
        %720 = vst [vmem:[%s203 + $0x64] sm:$0xf] %v656
        %721 = vst [vmem:[%s203 + $0x68] sm:$0xf] %v657
        %722 = vst [vmem:[%s203 + $0x6c] sm:$0xf] %v658
        %723 = vst [vmem:[%s203 + $0x70] sm:$0xf] %v659
        %724 = vst [vmem:[%s203 + $0x74] sm:$0xf] %v660
        %725 = vst [vmem:[%s203 + $0x78] sm:$0xf] %v661
        %726 = vst [vmem:[%s203 + $0x7c] sm:$0xf] %v662
        %s727 = sand.u32 %s97, 1
        %s728 = scalar_lea.sflag [#allocation4], %s727
        %s729 = sand.u32 %s97, 1
        %s730 = smul.addr %s729, 128
        %s731 = scalar_lea.vmem [#allocation7], %s730
        // Predicated region
        $region41: #{tpu_custom_call.1} parent=31 // pred_check
          %p732 = pneg %p107
        $region42: #{tpu_custom_call.1} parent=31 // pred_check_branch
          %734 = sbr.rel (%p732) target = $region44
        $region43: #{tpu_custom_call.1} parent=31 // pred_region
          %s735 = smul.u32 32, %s21
          %s737 = ssub.s32 2048, 2048
          %738 = vsyncadd %s728, %s737
          %s739 = smul.addr %s735, 64
          %s740 = scalar_lea.hbm %s3, %s739
          %s741 = sshll.u32 %s731, 4
          %s742 = int_to_ptr.vmem [resolvable:$true] %s741
          %747 = dma.vmem_to_hbm [thread:$0]  %s742, 2048, %s740, %s728, 64, 64, 4
        $region44: #{tpu_custom_call.1} parent=31 // pred_fallthru
          _
      $region32: #{tpu_custom_call.1} parent=5 // pred_fallthru
        _
      %p748 = scmp.le.s32.totalorder 2, %s16
      // Predicated region
      $region45: #{tpu_custom_call.1} parent=5 // pred_check
        %p749 = pneg %p748
      $region46: #{tpu_custom_call.1} parent=5 // pred_check_branch
        %751 = sbr.rel (%p749) target = $region48
      $region47: #{tpu_custom_call.1} parent=5 // pred_region
        %s752 = ssub.s32 %s16, 2
        // Predicated region
        $region49: #{tpu_custom_call.1} parent=47 // pred_check
          %p753 = pneg %p113
        $region50: #{tpu_custom_call.1} parent=47 // pred_check_branch
          %755 = sbr.rel (%p753) target = $region52
        $region51: #{tpu_custom_call.1} parent=47 // pred_region
          %s756 = sand.u32 %s98, 1
          %s757 = scalar_lea.sflag [#allocation4], %s756
          %s758 = sand.u32 %s98, 1
          %s759 = smul.addr %s758, 128
          %s760 = scalar_lea.vmem [#allocation7], %s759
          %761 = dma.done %s757, 2048
        $region52: #{tpu_custom_call.1} parent=47 // pred_fallthru
          _
      $region48: #{tpu_custom_call.1} parent=5 // pred_fallthru
        _
    $region6: #{tpu_custom_call.1} parent=1 // loop_footer
      %s20 = sadd.s32 1, %s16
    $region7: #{tpu_custom_call.1} parent=1 // loop_footer_branch
      %15 = sbr.rel target = $region3
    $region8: #{tpu_custom_call.1} parent=1 // loop_exit
      _
    %762 = vsyncpa [#allocation3], 1
    %s763 = scalar_lea.sflag [#allocation3], 1
    %764 = vsyncpa %s763, 1
    %765 = vsyncpa [#allocation6], 1
    %766 = vsyncpa [#allocation4], 1
    %s767 = scalar_lea.sflag [#allocation4], 1
    %768 = vsyncpa %s767, 1

</llo_original>
